<compile_context>
chip_gen: v5e
topology: v5e:2x2
jax: 0.10.0
libtpu: 0.0.40
codegen_flags: <defaults>
</compile_context>

<pallas_src>
import functools

import jax
import jax.numpy as jnp
from jax.experimental import pallas as pl
from jax.experimental.pallas import tpu as pltpu


def unified_ffn_kernel(
    x_ref,                  # (TILE_B, D_in)
    w1_ref, b1_ref,         # (D_in, 128), (1, 128)   -- BN1 folded in
    w2_ref, b2_ref,         # (128, 64),   (1, 64)    -- BN2 folded in
    wh_ref, bh_ref,         # (64, 4),     (1, 4)     -- heads concatenated
    out_ref,                # (TILE_B, 4)
):
    x = x_ref[...]

    # shared_fc1 (+ folded bn1) -> relu      (dropout = identity in eval)
    h1 = jnp.dot(x, w1_ref[...], preferred_element_type=jnp.float32) + b1_ref[...]
    h1 = jnp.maximum(h1, 0.0)

    # shared_fc2 (+ folded bn2) -> relu      (dropout = identity in eval)
    h2 = jnp.dot(h1, w2_ref[...], preferred_element_type=jnp.float32) + b2_ref[...]
    h2 = jnp.maximum(h2, 0.0)

    # all three heads as one fused matmul: columns = [class(2) | duration(1) | flow(1)]
    out_ref[...] = (
        jnp.dot(h2, wh_ref[...], preferred_element_type=jnp.float32) + bh_ref[...]
    )


def init_raw_params(key, input_dim):
    """PyTorch-style init (uniform +/- 1/sqrt(fan_in)) + synthetic BN running stats."""
    keys = jax.random.split(key, 20)

    def linear(kw, kb, fan_in, fan_out):
        bound = 1.0 / jnp.sqrt(jnp.float32(fan_in))
        w = jax.random.uniform(kw, (fan_in, fan_out), jnp.float32, -bound, bound)
        b = jax.random.uniform(kb, (1, fan_out), jnp.float32, -bound, bound)
        return w, b

    def bn(kg, kb, km, kv, n):
        gamma = jax.random.uniform(kg, (1, n), jnp.float32, 0.5, 1.5)
        beta = jax.random.uniform(kb, (1, n), jnp.float32, -0.5, 0.5)
        mean = jax.random.uniform(km, (1, n), jnp.float32, -0.5, 0.5)
        var = jax.random.uniform(kv, (1, n), jnp.float32, 0.5, 1.5)
        return gamma, beta, mean, var

    w1, b1 = linear(keys[0], keys[1], input_dim, 128)
    bn1 = bn(keys[2], keys[3], keys[4], keys[5], 128)
    w2, b2 = linear(keys[6], keys[7], 128, 64)
    bn2 = bn(keys[8], keys[9], keys[10], keys[11], 64)
    wc, bc = linear(keys[12], keys[13], 64, 2)
    wd, bd = linear(keys[14], keys[15], 64, 1)
    wf, bf = linear(keys[16], keys[17], 64, 1)
    return dict(w1=w1, b1=b1, bn1=bn1, w2=w2, b2=b2, bn2=bn2,
                wc=wc, bc=bc, wd=wd, bd=bd, wf=wf, bf=bf)


def fold_params(raw, eps=1e-5):
    """Fold eval-mode BN into the preceding linear; concat the three heads."""
    def fold(w, b, bn_stats):
        gamma, beta, mean, var = bn_stats
        scale = gamma / jnp.sqrt(var + eps)        # (1, N)
        shift = beta - mean * scale                # (1, N)
        return w * scale, b * scale + shift        # broadcast over in_features

    w1f, b1f = fold(raw["w1"], raw["b1"], raw["bn1"])
    w2f, b2f = fold(raw["w2"], raw["b2"], raw["bn2"])
    wh = jnp.concatenate([raw["wc"], raw["wd"], raw["wf"]], axis=1)   # (64, 4)
    bh = jnp.concatenate([raw["bc"], raw["bd"], raw["bf"]], axis=1)   # (1, 4)
    return (w1f, b1f, w2f, b2f, wh, bh)


@functools.partial(jax.jit, static_argnames=("max_tile_b",))
def unified_ffn(x, folded_params, max_tile_b=512):
    """Returns (class_out (B,2), duration_out (B,1), flow_out (B,1))."""
    w1, b1, w2, b2, wh, bh = folded_params
    B, D_in = x.shape
    H1, H2, HO = w1.shape[1], w2.shape[1], wh.shape[1]

    # Choose a batch tile: multiple of 8, capped (keeps VMEM use bounded on v7x),
    # and pad the batch so it divides evenly.
    tile_b = min(max_tile_b, max(8, ((B + 7) // 8) * 8))
    Bp = ((B + tile_b - 1) // tile_b) * tile_b
    if Bp != B:
        x = jnp.pad(x, ((0, Bp - B), (0, 0)))

    grid = (Bp // tile_b,)
    rep = lambda i: (0, 0)  # weights/biases are whole-array blocks for every step

    out = pl.pallas_call(
        unified_ffn_kernel,
        out_shape=jax.ShapeDtypeStruct((Bp, HO), jnp.float32),
        grid=grid,
        in_specs=[
            pl.BlockSpec((tile_b, D_in), lambda i: (i, 0)),
            pl.BlockSpec((D_in, H1), rep),
            pl.BlockSpec((1, H1), rep),
            pl.BlockSpec((H1, H2), rep),
            pl.BlockSpec((1, H2), rep),
            pl.BlockSpec((H2, HO), rep),
            pl.BlockSpec((1, HO), rep),
        ],
        out_specs=pl.BlockSpec((tile_b, HO), lambda i: (i, 0)),
        compiler_params=pltpu.CompilerParams(
            dimension_semantics=("parallel",),
        ),
    )(x, w1, b1, w2, b2, wh, bh)

    out = out[:B]
    return out[:, 0:2], out[:, 2:3], out[:, 3:4]


def unified_ffn_ref(x, raw, eps=1e-5):
    """Pure-JAX eval-mode reference using the UNFOLDED parameters."""
    def bn_apply(h, bn_stats):
        gamma, beta, mean, var = bn_stats
        return (h - mean) / jnp.sqrt(var + eps) * gamma + beta

    h1 = jnp.maximum(bn_apply(x @ raw["w1"] + raw["b1"], raw["bn1"]), 0.0)
    h2 = jnp.maximum(bn_apply(h1 @ raw["w2"] + raw["b2"], raw["bn2"]), 0.0)
    return (h2 @ raw["wc"] + raw["bc"],
            h2 @ raw["wd"] + raw["bd"],
            h2 @ raw["wf"] + raw["bf"])


if __name__ == "__main__":
    key = jax.random.PRNGKey(0)
    kx, kp = jax.random.split(key)

    batch, input_dim = 8, 32
    x = jax.random.normal(kx, (batch, input_dim), jnp.float32)

    raw = init_raw_params(kp, input_dim)
    folded = fold_params(raw)

    class_out, dur_out, flow_out = jax.block_until_ready(unified_ffn(x, folded))

    ref_c, ref_d, ref_f = unified_ffn_ref(x, raw)
    assert class_out.shape == (batch, 2)
    assert dur_out.shape == (batch, 1)
    assert flow_out.shape == (batch, 1)
    assert jnp.allclose(class_out, ref_c, atol=1e-4, rtol=1e-4)
    assert jnp.allclose(dur_out, ref_d, atol=1e-4, rtol=1e-4)
    assert jnp.allclose(flow_out, ref_f, atol=1e-4, rtol=1e-4)

    print("KERNEL_OK")
</pallas_src>

<mosaic_0001>
module attributes {stable_mosaic.version = 11 : i64} {
  func.func @unified_ffn_kernel(%arg0: i32, %arg1: memref<8x32xf32, #tpu.memory_space<vmem>>, %arg2: memref<32x128xf32, #tpu.memory_space<vmem>>, %arg3: memref<1x128xf32, #tpu.memory_space<vmem>>, %arg4: memref<128x64xf32, #tpu.memory_space<vmem>>, %arg5: memref<1x64xf32, #tpu.memory_space<vmem>>, %arg6: memref<64x4xf32, #tpu.memory_space<vmem>>, %arg7: memref<1x4xf32, #tpu.memory_space<vmem>>, %arg8: memref<8x4xf32, #tpu.memory_space<vmem>>) attributes {dimension_semantics = [#tpu.dimension_semantics<parallel>], iteration_bounds = array<i64: 1>, scalar_prefetch = 0 : i64, scratch_operands = 0 : i64, tpu.core_type = #tpu.core_type<tc>, window_params = [{transform_indices = @transform_0, window_bounds = array<i64: 8, 32>}, {pipeline_mode = #tpu.pipeline_mode<synchronous>, transform_indices = @transform_1, window_bounds = array<i64: 32, 128>}, {pipeline_mode = #tpu.pipeline_mode<synchronous>, transform_indices = @transform_2, window_bounds = array<i64: 1, 128>}, {pipeline_mode = #tpu.pipeline_mode<synchronous>, transform_indices = @transform_3, window_bounds = array<i64: 128, 64>}, {pipeline_mode = #tpu.pipeline_mode<synchronous>, transform_indices = @transform_4, window_bounds = array<i64: 1, 64>}, {pipeline_mode = #tpu.pipeline_mode<synchronous>, transform_indices = @transform_5, window_bounds = array<i64: 64, 4>}, {pipeline_mode = #tpu.pipeline_mode<synchronous>, transform_indices = @transform_6, window_bounds = array<i64: 1, 4>}, {transform_indices = @transform_7, window_bounds = array<i64: 8, 4>}]} {
    %c0 = arith.constant 0 : index
    %c0_0 = arith.constant 0 : index
    %0 = vector.load %arg1[%c0, %c0_0] : memref<8x32xf32, #tpu.memory_space<vmem>>, vector<8x32xf32>
    %c0_1 = arith.constant 0 : index
    %c0_2 = arith.constant 0 : index
    %1 = vector.load %arg2[%c0_1, %c0_2] : memref<32x128xf32, #tpu.memory_space<vmem>>, vector<32x128xf32>
    %cst = arith.constant dense<0.000000e+00> : vector<8x128xf32>
    %2 = tpu.matmul %0, %1, %cst {dimension_numbers = #tpu.dot_dimension_numbers<[1], [0], [0], [1], [0, 0, 1, 1], [], []>} : vector<8x32xf32>, vector<32x128xf32>, vector<8x128xf32> -> vector<8x128xf32>
    %c0_3 = arith.constant 0 : index
    %c0_4 = arith.constant 0 : index
    %3 = vector.load %arg3[%c0_3, %c0_4] : memref<1x128xf32, #tpu.memory_space<vmem>>, vector<1x128xf32>
    %4 = vector.broadcast %3 : vector<1x128xf32> to vector<8x128xf32>
    %5 = arith.addf %2, %4 : vector<8x128xf32>
    %cst_5 = arith.constant 0.000000e+00 : f32
    %6 = vector.broadcast %cst_5 : f32 to vector<8x128xf32>
    %7 = arith.maximumf %5, %6 : vector<8x128xf32>
    %c0_6 = arith.constant 0 : index
    %c0_7 = arith.constant 0 : index
    %8 = vector.load %arg4[%c0_6, %c0_7] : memref<128x64xf32, #tpu.memory_space<vmem>>, vector<128x64xf32>
    %cst_8 = arith.constant dense<0.000000e+00> : vector<8x64xf32>
    %9 = tpu.matmul %7, %8, %cst_8 {dimension_numbers = #tpu.dot_dimension_numbers<[1], [0], [0], [1], [0, 0, 1, 1], [], []>} : vector<8x128xf32>, vector<128x64xf32>, vector<8x64xf32> -> vector<8x64xf32>
    %c0_9 = arith.constant 0 : index
    %c0_10 = arith.constant 0 : index
    %10 = vector.load %arg5[%c0_9, %c0_10] : memref<1x64xf32, #tpu.memory_space<vmem>>, vector<1x64xf32>
    %11 = vector.broadcast %10 : vector<1x64xf32> to vector<8x64xf32>
    %12 = arith.addf %9, %11 : vector<8x64xf32>
    %cst_11 = arith.constant 0.000000e+00 : f32
    %13 = vector.broadcast %cst_11 : f32 to vector<8x64xf32>
    %14 = arith.maximumf %12, %13 : vector<8x64xf32>
    %c0_12 = arith.constant 0 : index
    %c0_13 = arith.constant 0 : index
    %15 = vector.load %arg6[%c0_12, %c0_13] : memref<64x4xf32, #tpu.memory_space<vmem>>, vector<64x4xf32>
    %cst_14 = arith.constant dense<0.000000e+00> : vector<8x4xf32>
    %16 = tpu.matmul %14, %15, %cst_14 {dimension_numbers = #tpu.dot_dimension_numbers<[1], [0], [0], [1], [0, 0, 1, 1], [], []>} : vector<8x64xf32>, vector<64x4xf32>, vector<8x4xf32> -> vector<8x4xf32>
    %c0_15 = arith.constant 0 : index
    %c0_16 = arith.constant 0 : index
    %17 = vector.load %arg7[%c0_15, %c0_16] : memref<1x4xf32, #tpu.memory_space<vmem>>, vector<1x4xf32>
    %18 = vector.broadcast %17 : vector<1x4xf32> to vector<8x4xf32>
    %19 = arith.addf %16, %18 : vector<8x4xf32>
    %c0_17 = arith.constant 0 : index
    %c0_18 = arith.constant 0 : index
    %20 = vector.load %arg8[%c0_17, %c0_18] : memref<8x4xf32, #tpu.memory_space<vmem>>, vector<8x4xf32>
    tpu.vector_store %arg8[%c0_17, %c0_18], %19 {strides = array<i32>} : memref<8x4xf32, #tpu.memory_space<vmem>>, vector<8x4xf32>,
    return
  }
  func.func @transform_0(%arg0: i32) -> (i32, i32) {
    %c0_i32 = arith.constant 0 : i32
    %c0_i32_0 = arith.constant 0 : i32
    return %arg0, %c0_i32 : i32, i32
  }
  func.func @transform_1(%arg0: i32) -> (i32, i32) {
    %c0_i32 = arith.constant 0 : i32
    %c0_i32_0 = arith.constant 0 : i32
    %c0_i32_1 = arith.constant 0 : i32
    return %c0_i32, %c0_i32_0 : i32, i32
  }
  func.func @transform_2(%arg0: i32) -> (i32, i32) {
    %c0_i32 = arith.constant 0 : i32
    %c0_i32_0 = arith.constant 0 : i32
    %c0_i32_1 = arith.constant 0 : i32
    return %c0_i32, %c0_i32_0 : i32, i32
  }
  func.func @transform_3(%arg0: i32) -> (i32, i32) {
    %c0_i32 = arith.constant 0 : i32
    %c0_i32_0 = arith.constant 0 : i32
    %c0_i32_1 = arith.constant 0 : i32
    return %c0_i32, %c0_i32_0 : i32, i32
  }
  func.func @transform_4(%arg0: i32) -> (i32, i32) {
    %c0_i32 = arith.constant 0 : i32
    %c0_i32_0 = arith.constant 0 : i32
    %c0_i32_1 = arith.constant 0 : i32
    return %c0_i32, %c0_i32_0 : i32, i32
  }
  func.func @transform_5(%arg0: i32) -> (i32, i32) {
    %c0_i32 = arith.constant 0 : i32
    %c0_i32_0 = arith.constant 0 : i32
    %c0_i32_1 = arith.constant 0 : i32
    return %c0_i32, %c0_i32_0 : i32, i32
  }
  func.func @transform_6(%arg0: i32) -> (i32, i32) {
    %c0_i32 = arith.constant 0 : i32
    %c0_i32_0 = arith.constant 0 : i32
    %c0_i32_1 = arith.constant 0 : i32
    return %c0_i32, %c0_i32_0 : i32, i32
  }
  func.func @transform_7(%arg0: i32) -> (i32, i32) {
    %c0_i32 = arith.constant 0 : i32
    %c0_i32_0 = arith.constant 0 : i32
    return %arg0, %c0_i32 : i32, i32
  }
}

</mosaic_0001>

<llo_original>
// kernel: unified_ffn.1
$region0: #{unified_ffn.1}
  #allocation0 [shape = 'u32[]', space=smem, size = 0x4, offset = 0x4, fixed_abs, tag = 'smem constant byte address 0x4 - core index']
  #allocation1 [shape = 'u32[72,128]{1,0:T(1,128)}', space=vmem, size = 0x9000, scoped, tag = 'internal scratch']
  %s0 = inlined_call_operand.vmem [shape: f32[8,32], index: 0, kind: input, shape index: {}]
  %s1 = inlined_call_operand.vmem [shape: f32[32,128], index: 1, kind: input, shape index: {}]
  %s2 = inlined_call_operand.vmem [shape: f32[1,128], index: 2, kind: input, shape index: {}]
  %s3 = inlined_call_operand.vmem [shape: f32[128,64], index: 3, kind: input, shape index: {}]
  %s4 = inlined_call_operand.vmem [shape: f32[1,64], index: 4, kind: input, shape index: {}]
  %s5 = inlined_call_operand.vmem [shape: f32[64,4], index: 5, kind: input, shape index: {}]
  %s6 = inlined_call_operand.vmem [shape: f32[1,4], index: 6, kind: input, shape index: {}]
  %s7 = inlined_call_operand.vmem [shape: f32[8,4], index: 7, kind: output, shape index: {}]
  %s8 = sld [smem:[#allocation0]]
  $region38: #{unified_ffn.1} parent=0
    _
  %s10 = ssub.s32 1, %s8
  %s11 = scalar_select 0, %s10, %s8
  // Predicated region
  $region2: #{unified_ffn.1} parent=0 // pred_check
    _
  $region3: #{unified_ffn.1} parent=0 // pred_check_branch
    %13 = sbr.rel (0) target = $region5
  $region4: #{unified_ffn.1} parent=0 // pred_region
    _
  $region5: #{unified_ffn.1} parent=0 // pred_fallthru
    _
  // Predicated region
  $region6: #{unified_ffn.1} parent=0 // pred_check
    _
  $region7: #{unified_ffn.1} parent=0 // pred_check_branch
    %15 = sbr.rel (0) target = $region9
  $region8: #{unified_ffn.1} parent=0 // pred_region
    _
  $region9: #{unified_ffn.1} parent=0 // pred_fallthru
    _
  // Predicated region
  $region10: #{unified_ffn.1} parent=0 // pred_check
    _
  $region11: #{unified_ffn.1} parent=0 // pred_check_branch
    %17 = sbr.rel (0) target = $region13
  $region12: #{unified_ffn.1} parent=0 // pred_region
    _
  $region13: #{unified_ffn.1} parent=0 // pred_fallthru
    _
  // Predicated region
  $region14: #{unified_ffn.1} parent=0 // pred_check
    _
  $region15: #{unified_ffn.1} parent=0 // pred_check_branch
    %19 = sbr.rel (0) target = $region17
  $region16: #{unified_ffn.1} parent=0 // pred_region
    _
  $region17: #{unified_ffn.1} parent=0 // pred_fallthru
    _
  // Predicated region
  $region18: #{unified_ffn.1} parent=0 // pred_check
    _
  $region19: #{unified_ffn.1} parent=0 // pred_check_branch
    %21 = sbr.rel (0) target = $region21
  $region20: #{unified_ffn.1} parent=0 // pred_region
    _
  $region21: #{unified_ffn.1} parent=0 // pred_fallthru
    _
  // Predicated region
  $region22: #{unified_ffn.1} parent=0 // pred_check
    _
  $region23: #{unified_ffn.1} parent=0 // pred_check_branch
    %23 = sbr.rel (0) target = $region25
  $region24: #{unified_ffn.1} parent=0 // pred_region
    _
  $region25: #{unified_ffn.1} parent=0 // pred_fallthru
    _
  // Predicated region
  $region26: #{unified_ffn.1} parent=0 // pred_check
    _
  $region27: #{unified_ffn.1} parent=0 // pred_check_branch
    %25 = sbr.rel (0) target = $region29
  $region28: #{unified_ffn.1} parent=0 // pred_region
    _
  $region29: #{unified_ffn.1} parent=0 // pred_fallthru
    _
  %v26 = vld [vmem:[%s0] sm:$0xff]
  %v27 = vld [vmem:[%s1] sm:$0xff]
  %v28 = vld [vmem:[%s1 + $0x8] sm:$0xff]
  %v29 = vld [vmem:[%s1 + $0x10] sm:$0xff]
  %v30 = vld [vmem:[%s1 + $0x18] sm:$0xff]
  %v31 = vld [vmem:[%s2] sm:$0x1]
  %v33 = vperm.slane %v31, 0
  %vm35 = vcmask 261120
  %v37 = vsel %vm35, %v26, 0
  %39 = vmatpush.msra.mxu0 0.0
  %40 = vmatpush.msra.mxu0 0.0
  %41 = vmatpush.msra.mxu0 0.0
  %42 = vmatpush.msra.mxu0 0.0
  %43 = vmatpush.msra.mxu0 0.0
  %44 = vmatpush.msra.mxu0 0.0
  %45 = vmatpush.msra.mxu0 0.0
  %46 = vmatpush.msra.mxu0 0.0
  %47 = vmatpush.msra.mxu0 0.0
  %48 = vmatpush.msra.mxu0 0.0
  %49 = vmatpush.msra.mxu0 0.0
  %50 = vmatpush.msra.mxu0 0.0
  %51 = vmatpush.msra.mxu0 %v30
  %52 = vmatpush.msra.mxu0 %v29
  %53 = vmatpush.msra.mxu0 %v28
  %54 = vmatpush.msra.mxu0 %v27
  %55 = vmatmul.f32.gmra.mxu0 %v37
  %v56 = vpop.f32.mrf.mxu0
  %v57 = vadd.f32 %v33, %v56
  %58 = vdwg.mxu0
  %v59 = vmax.f32 %v57, 0.0
  %v60 = vld [vmem:[%s3] sm:$0xff]
  %v61 = vld [vmem:[%s3 + $0x8] sm:$0xff]
  %v62 = vld [vmem:[%s3 + $0x10] sm:$0xff]
  %v63 = vld [vmem:[%s3 + $0x18] sm:$0xff]
  %v64 = vld [vmem:[%s3 + $0x20] sm:$0xff]
  %v65 = vld [vmem:[%s3 + $0x28] sm:$0xff]
  %v66 = vld [vmem:[%s3 + $0x30] sm:$0xff]
  %v67 = vld [vmem:[%s3 + $0x38] sm:$0xff]
  %v68 = vld [vmem:[%s3 + $0x40] sm:$0xff]
  %v69 = vld [vmem:[%s3 + $0x48] sm:$0xff]
  %v70 = vld [vmem:[%s3 + $0x50] sm:$0xff]
  %v71 = vld [vmem:[%s3 + $0x58] sm:$0xff]
  %v72 = vld [vmem:[%s3 + $0x60] sm:$0xff]
  %v73 = vld [vmem:[%s3 + $0x68] sm:$0xff]
  %v74 = vld [vmem:[%s3 + $0x70] sm:$0xff]
  %v75 = vld [vmem:[%s3 + $0x78] sm:$0xff]
  %v76 = vld [vmem:[%s4] sm:$0x1]
  %v78 = vperm.slane %v76, 0
  %80 = vmatpush.msra.mxu0 %v75
  %81 = vmatpush.msra.mxu0 %v74
  %82 = vmatpush.msra.mxu0 %v73
  %83 = vmatpush.msra.mxu0 %v72
  %84 = vmatpush.msra.mxu0 %v71
  %85 = vmatpush.msra.mxu0 %v70
  %86 = vmatpush.msra.mxu0 %v69
  %87 = vmatpush.msra.mxu0 %v68
  %88 = vmatpush.msra.mxu0 %v67
  %89 = vmatpush.msra.mxu0 %v66
  %90 = vmatpush.msra.mxu0 %v65
  %91 = vmatpush.msra.mxu0 %v64
  %92 = vmatpush.msra.mxu0 %v63
  %93 = vmatpush.msra.mxu0 %v62
  %94 = vmatpush.msra.mxu0 %v61
  %95 = vmatpush.msra.mxu0 %v60
  %96 = vmatmul.f32.gmra.mxu0 %v59
  %v97 = vpop.f32.mrf.mxu0
  %v98 = vadd.f32 %v78, %v97
  %99 = vdwg.mxu0
  %v100 = vmax.f32 %v98, 0.0
  %v101 = vld [vmem:[%s5] sm:$0xff]
  %v102 = vld [vmem:[%s5 + $0x8] sm:$0xff]
  %v103 = vld [vmem:[%s5 + $0x10] sm:$0xff]
  %v104 = vld [vmem:[%s5 + $0x18] sm:$0xff]
  %v105 = vld [vmem:[%s5 + $0x20] sm:$0xff]
  %v106 = vld [vmem:[%s5 + $0x28] sm:$0xff]
  %v107 = vld [vmem:[%s5 + $0x30] sm:$0xff]
  %v108 = vld [vmem:[%s5 + $0x38] sm:$0xff]
  %v109 = vld [vmem:[%s6] sm:$0x1]
  %v111 = vperm.slane %v109, 0
  %vm113 = vcmask 523264
  %v115 = vsel %vm113, %v100, 0
  %117 = vmatpush.msra.mxu0 0.0
  %118 = vmatpush.msra.mxu0 0.0
  %119 = vmatpush.msra.mxu0 0.0
  %120 = vmatpush.msra.mxu0 0.0
  %121 = vmatpush.msra.mxu0 0.0
  %122 = vmatpush.msra.mxu0 0.0
  %123 = vmatpush.msra.mxu0 0.0
  %124 = vmatpush.msra.mxu0 0.0
  %125 = vmatpush.msra.mxu0 %v108
  %126 = vmatpush.msra.mxu0 %v107
  %127 = vmatpush.msra.mxu0 %v106
  %128 = vmatpush.msra.mxu0 %v105
  %129 = vmatpush.msra.mxu0 %v104
  %130 = vmatpush.msra.mxu0 %v103
  %131 = vmatpush.msra.mxu0 %v102
  %132 = vmatpush.msra.mxu0 %v101
  %133 = vmatmul.f32.gmra.mxu0 %v115
  %v134 = vpop.f32.mrf.mxu0
  %v135 = vadd.f32 %v111, %v134
  %136 = vdwg.mxu0
  %vm137 = vcmask 31744
  %138 = vst.msk [vmem:[%s7] sm:$0xff] %vm137, %v135
  // Predicated region
  $region30: #{unified_ffn.1} parent=0 // pred_check
    _
  $region31: #{unified_ffn.1} parent=0 // pred_check_branch
    %140 = sbr.rel (0) target = $region33
  $region32: #{unified_ffn.1} parent=0 // pred_region
    _
  $region33: #{unified_ffn.1} parent=0 // pred_fallthru
    _
  // Predicated region
  $region34: #{unified_ffn.1} parent=0 // pred_check
    _
  $region35: #{unified_ffn.1} parent=0 // pred_check_branch
    %142 = sbr.rel (0) target = $region37
  $region36: #{unified_ffn.1} parent=0 // pred_region
    _
  $region37: #{unified_ffn.1} parent=0 // pred_fallthru
    _

</llo_original>
